<compile_context>
chip_gen: v7x
topology: tpu7x:2x2x1
jax: 0.10.0
libtpu: 0.0.40
codegen_flags: <defaults>
</compile_context>

<pallas_src>
import jax
import jax.numpy as jnp
from jax.experimental import pallas as pl
from jax.experimental.pallas import tpu as pltpu


LANE = 512            # lane-axis width of a block (multiple of 128)
MAX_ROW_TILE = 1024   # sublane rows per grid step: 1024*512*4B = 2 MiB out / 4 MiB in
MIN_GRID_STEPS = 8    # keep several parallel steps for v7x megacore sharding


def simple_nn_kernel(xT_ref, p_ref, o_ref):
    # xT_ref: (2, tr, LANE) f32 in VMEM (features on axis 0, batch dense on sublanes+lanes)
    # p_ref : (9,)          f32 in SMEM [w1_00,w1_01,w1_10,w1_11,b1_0,b1_1,w2_00,w2_01,b2_0]
    # o_ref : (tr, LANE)    f32 in VMEM
    x0 = xT_ref[0]                           # (tr, LANE)
    x1 = xT_ref[1]                           # (tr, LANE)

    # fc1 + ReLU, unrolled as VPU FMAs with SMEM scalar broadcasts
    # (PyTorch: h_j = x0 * W1[j,0] + x1 * W1[j,1] + b1[j])
    h0 = jnp.maximum(x0 * p_ref[0] + x1 * p_ref[1] + p_ref[4], 0.0)
    h1 = jnp.maximum(x0 * p_ref[2] + x1 * p_ref[3] + p_ref[5], 0.0)

    # fc2: y = h0 * W2[0,0] + h1 * W2[0,1] + b2
    y = h0 * p_ref[6] + h1 * p_ref[7] + p_ref[8]

    # single fully dense store per tile
    o_ref[...] = y.astype(o_ref.dtype)


def _pack_params(w1, b1, w2, b2):
    # PyTorch layout: w (out_features, in_features), b (out_features,)
    return jnp.concatenate(
        [w1.reshape(-1), b1.reshape(-1), w2.reshape(-1), b2.reshape(-1)]
    ).astype(jnp.float32)                    # shape (9,)


def _row_tile(R):
    """Pick the sublane-row tile size for a (R, LANE) output array."""
    if R <= 8:
        return R                             # single step; block dim == full dim is legal
    tr = max(8, pl.cdiv(R, MIN_GRID_STEPS))  # aim for >= MIN_GRID_STEPS steps
    tr = pl.cdiv(tr, 8) * 8                  # multiple of 8 sublanes
    return min(tr, MAX_ROW_TILE)


def simple_nn_forward_feature_major(xT, params):
    """Pallas path. xT: (2, B) float32 feature-major. Returns (B,) float32."""
    B = xT.shape[1]
    R = pl.cdiv(B, LANE)
    Bp = R * LANE
    if Bp != B:
        xT = jnp.pad(xT, ((0, 0), (0, Bp - B)))      # tiny tail pad (< LANE elements)
    xT = xT.reshape(2, R, LANE)

    tr = _row_tile(R)
    grid = (pl.cdiv(R, tr),)                          # partial tail block is masked

    y = pl.pallas_call(
        simple_nn_kernel,
        out_shape=jax.ShapeDtypeStruct((R, LANE), jnp.float32),
        grid=grid,
        in_specs=[
            pl.BlockSpec((2, tr, LANE), lambda i: (0, i, 0)),     # x tiles (VMEM)
            pl.BlockSpec(memory_space=pltpu.MemorySpace.SMEM),    # params, untiled
        ],
        out_specs=pl.BlockSpec((tr, LANE), lambda i: (i, 0)),
        compiler_params=pltpu.CompilerParams(
            dimension_semantics=("parallel",),        # batch axis is embarrassingly parallel
            vmem_limit_bytes=48 * 1024 * 1024,        # fits v5e/v6e/v7x; >> actual ~12 MiB use
        ),
    )(xT, params)

    return y.reshape(Bp)[:B]


def simple_nn_forward(x, w1, b1, w2, b2, *, min_pallas_batch=4096):
    """Forward pass of SimpleNN.

    x : (B, 2); w1: (2, 2); b1: (2,); w2: (1, 2); b2: (1,)  (PyTorch layouts)
    returns (B, 1), same dtype as x.
    """
    B = x.shape[0]

    if B < min_pallas_batch:
        # Small-batch fallback: fused XLA is strictly faster than kernel launch.
        xf = x.astype(jnp.float32)
        h = jnp.maximum(xf @ w1.astype(jnp.float32).T + b1.astype(jnp.float32), 0.0)
        y = h @ w2.astype(jnp.float32).T + b2.astype(jnp.float32)
        return y.astype(x.dtype)

    params = _pack_params(w1, b1, w2, b2)
    xT = x.astype(jnp.float32).T                      # (2, B) feature-major
    y = simple_nn_forward_feature_major(xT, params)
    return y.reshape(B, 1).astype(x.dtype)


def init_params(key):
    """PyTorch nn.Linear default init U(-1/sqrt(fan_in), +1/sqrt(fan_in)), PyTorch layout."""
    k1, k2, k3, k4 = jax.random.split(key, 4)
    bound1 = 1.0 / jnp.sqrt(2.0)   # fc1: Linear(2, 2)
    w1 = jax.random.uniform(k1, (2, 2), jnp.float32, -bound1, bound1)
    b1 = jax.random.uniform(k2, (2,), jnp.float32, -bound1, bound1)
    bound2 = 1.0 / jnp.sqrt(2.0)   # fc2: Linear(2, 1)
    w2 = jax.random.uniform(k3, (1, 2), jnp.float32, -bound2, bound2)
    b2 = jax.random.uniform(k4, (1,), jnp.float32, -bound2, bound2)
    return w1, b1, w2, b2


if __name__ == "__main__":
    key = jax.random.PRNGKey(0)
    k_x1, k_x2, k_p = jax.random.split(key, 3)
    w1, b1, w2, b2 = init_params(k_p)

    def ref(x):
        # Pure-JAX reference of the same math (PyTorch convention: x @ W.T + b).
        return jnp.maximum(x @ w1.T + b1, 0.0) @ w2.T + b2

    # 1) small batch, forced through the Pallas path (single grid step)
    x_small = jax.random.normal(k_x1, (8, 2), dtype=jnp.float32)
    out_small = jax.block_until_ready(
        simple_nn_forward(x_small, w1, b1, w2, b2, min_pallas_batch=0))
    assert out_small.shape == (8, 1)
    assert jnp.allclose(out_small, ref(x_small), atol=1e-5, rtol=1e-5)

    # 2) batch not a multiple of the lane tile -> tail pad + multi-step grid + partial block
    Bm = 8 * LANE + 5
    x_mid = jax.random.normal(k_x2, (Bm, 2), dtype=jnp.float32)
    out_mid = jax.block_until_ready(
        simple_nn_forward(x_mid, w1, b1, w2, b2, min_pallas_batch=0))
    assert out_mid.shape == (Bm, 1)
    assert jnp.allclose(out_mid, ref(x_mid), atol=1e-5, rtol=1e-5)

    # 3) default dispatch: small batches go through the fused XLA fallback
    out_fb = jax.block_until_ready(simple_nn_forward(x_small, w1, b1, w2, b2))
    assert jnp.allclose(out_fb, ref(x_small), atol=1e-5, rtol=1e-5)

    print("KERNEL_OK")
</pallas_src>

<mosaic_0001>
module attributes {stable_mosaic.version = 11 : i64} {
  func.func @simple_nn_kernel(%arg0: i32, %arg1: memref<2x1x512xf32, #tpu.memory_space<vmem>>, %arg2: memref<9xf32, #tpu.memory_space<smem>>, %arg3: memref<1x512xf32, #tpu.memory_space<vmem>>) attributes {dimension_semantics = [#tpu.dimension_semantics<parallel>], iteration_bounds = array<i64: 1>, scalar_prefetch = 0 : i64, scratch_operands = 0 : i64, tpu.core_type = #tpu.core_type<tc>, window_params = [{transform_indices = @transform_0, window_bounds = array<i64: 2, 1, 512>}, {transform_indices = @transform_1, window_bounds = array<i64: 9>}, {transform_indices = @transform_2, window_bounds = array<i64: 1, 512>}]} {
    %c0 = arith.constant 0 : index
    %c0_0 = arith.constant 0 : index
    %c0_1 = arith.constant 0 : index
    %0 = vector.load %arg1[%c0, %c0_0, %c0_1] : memref<2x1x512xf32, #tpu.memory_space<vmem>>, vector<1x1x512xf32>
    %1 = vector.shape_cast %0 : vector<1x1x512xf32> to vector<1x512xf32>
    %c1 = arith.constant 1 : index
    %c0_2 = arith.constant 0 : index
    %c0_3 = arith.constant 0 : index
    %2 = vector.load %arg1[%c1, %c0_2, %c0_3] : memref<2x1x512xf32, #tpu.memory_space<vmem>>, vector<1x1x512xf32>
    %3 = vector.shape_cast %2 : vector<1x1x512xf32> to vector<1x512xf32>
    %c0_4 = arith.constant 0 : index
    %4 = memref.load %arg2[%c0_4] : memref<9xf32, #tpu.memory_space<smem>>
    %5 = vector.broadcast %4 : f32 to vector<1x512xf32>
    %6 = arith.mulf %1, %5 : vector<1x512xf32>
    %c1_5 = arith.constant 1 : index
    %7 = memref.load %arg2[%c1_5] : memref<9xf32, #tpu.memory_space<smem>>
    %8 = vector.broadcast %7 : f32 to vector<1x512xf32>
    %9 = arith.mulf %3, %8 : vector<1x512xf32>
    %10 = arith.addf %6, %9 : vector<1x512xf32>
    %c4 = arith.constant 4 : index
    %11 = memref.load %arg2[%c4] : memref<9xf32, #tpu.memory_space<smem>>
    %12 = vector.broadcast %11 : f32 to vector<1x512xf32>
    %13 = arith.addf %10, %12 : vector<1x512xf32>
    %cst = arith.constant 0.000000e+00 : f32
    %14 = vector.broadcast %cst : f32 to vector<1x512xf32>
    %15 = arith.maximumf %13, %14 : vector<1x512xf32>
    %c2 = arith.constant 2 : index
    %16 = memref.load %arg2[%c2] : memref<9xf32, #tpu.memory_space<smem>>
    %17 = vector.broadcast %16 : f32 to vector<1x512xf32>
    %18 = arith.mulf %1, %17 : vector<1x512xf32>
    %c3 = arith.constant 3 : index
    %19 = memref.load %arg2[%c3] : memref<9xf32, #tpu.memory_space<smem>>
    %20 = vector.broadcast %19 : f32 to vector<1x512xf32>
    %21 = arith.mulf %3, %20 : vector<1x512xf32>
    %22 = arith.addf %18, %21 : vector<1x512xf32>
    %c5 = arith.constant 5 : index
    %23 = memref.load %arg2[%c5] : memref<9xf32, #tpu.memory_space<smem>>
    %24 = vector.broadcast %23 : f32 to vector<1x512xf32>
    %25 = arith.addf %22, %24 : vector<1x512xf32>
    %cst_6 = arith.constant 0.000000e+00 : f32
    %26 = vector.broadcast %cst_6 : f32 to vector<1x512xf32>
    %27 = arith.maximumf %25, %26 : vector<1x512xf32>
    %c6 = arith.constant 6 : index
    %28 = memref.load %arg2[%c6] : memref<9xf32, #tpu.memory_space<smem>>
    %29 = vector.broadcast %28 : f32 to vector<1x512xf32>
    %30 = arith.mulf %15, %29 : vector<1x512xf32>
    %c7 = arith.constant 7 : index
    %31 = memref.load %arg2[%c7] : memref<9xf32, #tpu.memory_space<smem>>
    %32 = vector.broadcast %31 : f32 to vector<1x512xf32>
    %33 = arith.mulf %27, %32 : vector<1x512xf32>
    %34 = arith.addf %30, %33 : vector<1x512xf32>
    %c8 = arith.constant 8 : index
    %35 = memref.load %arg2[%c8] : memref<9xf32, #tpu.memory_space<smem>>
    %36 = vector.broadcast %35 : f32 to vector<1x512xf32>
    %37 = arith.addf %34, %36 : vector<1x512xf32>
    %c0_7 = arith.constant 0 : index
    %c0_8 = arith.constant 0 : index
    %38 = vector.load %arg3[%c0_7, %c0_8] : memref<1x512xf32, #tpu.memory_space<vmem>>, vector<1x512xf32>
    tpu.vector_store %arg3[%c0_7, %c0_8], %37 {strides = array<i32>} : memref<1x512xf32, #tpu.memory_space<vmem>>, vector<1x512xf32>,
    return
  }
  func.func @transform_0(%arg0: i32) -> (i32, i32, i32) {
    %c0_i32 = arith.constant 0 : i32
    %c0_i32_0 = arith.constant 0 : i32
    %c0_i32_1 = arith.constant 0 : i32
    return %c0_i32, %arg0, %c0_i32_0 : i32, i32, i32
  }
  func.func @transform_1(%arg0: i32) -> i32 {
    %c0_i32 = arith.constant 0 : i32
    %c0_i32_0 = arith.constant 0 : i32
    return %c0_i32 : i32
  }
  func.func @transform_2(%arg0: i32) -> (i32, i32) {
    %c0_i32 = arith.constant 0 : i32
    %c0_i32_0 = arith.constant 0 : i32
    return %arg0, %c0_i32 : i32, i32
  }
}

</mosaic_0001>

<llo_original>
// kernel: tpu_custom_call.1
$region0: #{tpu_custom_call.1}
  #allocation0 [shape = 'u32[]', space=smem, size = 0x4, offset = 0x4, fixed_abs, tag = 'smem constant byte address 0x4 - core index']
  #allocation1 [shape = 'u32[144,128]{1,0:T(1,128)}', space=vmem, size = 0x12000, scoped, tag = 'internal scratch']
  %s0 = inlined_call_operand.hbm [shape: f32[2,1,512], index: 0, kind: input, shape index: {}]
  %s1 = inlined_call_operand.vmem [shape: f32[9], index: 1, kind: input, shape index: {}]
  %s2 = inlined_call_operand.hbm [shape: f32[1,512], index: 2, kind: output, shape index: {}]
  %s3 = sld [smem:[#allocation0]]
  $region26: #{tpu_custom_call.1} parent=0
    _
  %s5 = ssub.s32 1, %s3
  %s6 = scalar_select 0, %s5, %s3
  $region1: #{tpu_custom_call.1} parent=0
    #allocation2 [shape = 'u8[4096]{0}', space=vmem, size = 0x1000, scoped, tag = 'input window, operand 0, single buffered']
    #allocation3 [shape = 's32[1]{0}', space=sflag, size = 0x4, scoped, tag = 'scoped memory for tpu_custom_call.1']
    #allocation4 [shape = 's32[1]{0}', space=sflag, size = 0x4, scoped, tag = 'scoped memory for tpu_custom_call.1']
    #allocation5 [shape = 's32[1]{0}', space=sflag, size = 0x4, scoped, tag = 'scoped memory for tpu_custom_call.1']
    #allocation6 [shape = 'u8[512]{0}', space=smem, size = 0x200, scoped, tag = 'input window, operand 1, single buffered']
    #allocation7 [shape = 'u8[2048]{0}', space=vmem, size = 0x800, scoped, tag = 'output window, operand 0, single buffered']
    %7 = vsyncpa [#allocation3], 0
    %8 = vsyncpa [#allocation5], 0
    %9 = vsyncpa [#allocation4], 0
    // Predicated region
    $region2: #{tpu_custom_call.1} parent=1 // pred_check
      _
    $region3: #{tpu_custom_call.1} parent=1 // pred_check_branch
      %11 = sbr.rel (0) target = $region5
    $region4: #{tpu_custom_call.1} parent=1 // pred_region
      %s13 = ssub.s32 128, 128
      %14 = vsyncadd [#allocation3], %s13
      %s15 = sshll.u32 [#allocation2], 4
      %s16 = int_to_ptr.vmem [resolvable:$true] %s15
      %21 = dma.hbm_to_vmem [thread:$0]  %s0, 128, %s16, [#allocation3], 64, 64, 4
    $region5: #{tpu_custom_call.1} parent=1 // pred_fallthru
      _
    // Predicated region
    $region6: #{tpu_custom_call.1} parent=1 // pred_check
      _
    $region7: #{tpu_custom_call.1} parent=1 // pred_check_branch
      %23 = sbr.rel (0) target = $region9
    $region8: #{tpu_custom_call.1} parent=1 // pred_region
      %s25 = ssub.s32 16, 16
      %26 = vsyncadd [#allocation5], %s25
      %s28 = sshll.u32 %s1, 4
      %s29 = int_to_ptr.vmem [resolvable:$true] %s28
      %31 = dma.vmem_to_smem %s29, 16, [#allocation6], [#allocation5]
    $region9: #{tpu_custom_call.1} parent=1 // pred_fallthru
      _
    // Predicated region
    $region10: #{tpu_custom_call.1} parent=1 // pred_check
      _
    $region11: #{tpu_custom_call.1} parent=1 // pred_check_branch
      %33 = sbr.rel (0) target = $region13
    $region12: #{tpu_custom_call.1} parent=1 // pred_region
      %34 = dma.done [#allocation3], 128
    $region13: #{tpu_custom_call.1} parent=1 // pred_fallthru
      _
    // Predicated region
    $region14: #{tpu_custom_call.1} parent=1 // pred_check
      _
    $region15: #{tpu_custom_call.1} parent=1 // pred_check_branch
      %36 = sbr.rel (0) target = $region17
    $region16: #{tpu_custom_call.1} parent=1 // pred_region
      %37 = dma.done [#allocation5], 16
    $region17: #{tpu_custom_call.1} parent=1 // pred_fallthru
      _
    %38 = sfence
    %v39 = vld [vmem:[#allocation2] sm:$0xf]
    %s40 = scalar_lea.vmem [#allocation2], 4
    %v41 = vld [vmem:[%s40] sm:$0xf]
    %s42 = sld [smem:[#allocation6]]
    %v43 = vstv %s42
    %v44 = vmul.f32 %v39, %v43
    %s45 = sld [smem:[#allocation6 + $0x1]]
    %v46 = vstv %s45
    %v47 = vmul.f32 %v41, %v46
    %v48 = vadd.f32 %v44, %v47
    %s49 = sld [smem:[#allocation6 + $0x4]]
    %v50 = vstv %s49
    %v51 = vadd.f32 %v48, %v50
    %v52 = vmax.f32 %v51, 0.0
    %s53 = sld [smem:[#allocation6 + $0x2]]
    %v54 = vstv %s53
    %v55 = vmul.f32 %v39, %v54
    %s56 = sld [smem:[#allocation6 + $0x3]]
    %v57 = vstv %s56
    %v58 = vmul.f32 %v41, %v57
    %v59 = vadd.f32 %v55, %v58
    %s60 = sld [smem:[#allocation6 + $0x5]]
    %v61 = vstv %s60
    %v62 = vadd.f32 %v59, %v61
    %v63 = vmax.f32 %v62, 0.0
    %s64 = sld [smem:[#allocation6 + $0x6]]
    %v65 = vstv %s64
    %v66 = vmul.f32 %v52, %v65
    %s67 = sld [smem:[#allocation6 + $0x7]]
    %v68 = vstv %s67
    %v69 = vmul.f32 %v63, %v68
    %v70 = vadd.f32 %v66, %v69
    %s71 = sld [smem:[#allocation6 + $0x8]]
    %v72 = vstv %s71
    %v73 = vadd.f32 %v70, %v72
    %v74 = vlaneseq
    %vm75 = vcmp.ge.s32.totalorder %v74, 0
    %vm76 = vcmp.lt.s32.totalorder %v74, 512
    %vm77 = vmand %vm75, %vm76
    %78 = vst.msk [vmem:[#allocation7] sm:$0xf] %vm77, %v73
    // Predicated region
    $region18: #{tpu_custom_call.1} parent=1 // pred_check
      _
    $region19: #{tpu_custom_call.1} parent=1 // pred_check_branch
      %80 = sbr.rel (0) target = $region21
    $region20: #{tpu_custom_call.1} parent=1 // pred_region
      %s82 = ssub.s32 64, 64
      %83 = vsyncadd [#allocation4], %s82
      %s85 = sshll.u32 [#allocation7], 4
      %s86 = int_to_ptr.vmem [resolvable:$true] %s85
      %88 = dma.vmem_to_hbm [thread:$0]  %s86, 64, %s2, [#allocation4]
    $region21: #{tpu_custom_call.1} parent=1 // pred_fallthru
      _
    // Predicated region
    $region22: #{tpu_custom_call.1} parent=1 // pred_check
      _
    $region23: #{tpu_custom_call.1} parent=1 // pred_check_branch
      %90 = sbr.rel (0) target = $region25
    $region24: #{tpu_custom_call.1} parent=1 // pred_region
      %91 = dma.done [#allocation4], 64
    $region25: #{tpu_custom_call.1} parent=1 // pred_fallthru
      _
    %92 = vsyncpa [#allocation3], 1
    %93 = vsyncpa [#allocation4], 1
    %94 = vsyncpa [#allocation5], 1

</llo_original>
